<compile_context>
chip_gen: v7x
topology: tpu7x:2x2x1
jax: 0.10.0
libtpu: 0.0.40
codegen_flags: <defaults>
</compile_context>

<pallas_src>
import jax
import jax.numpy as jnp
from jax.experimental import pallas as pl
from jax.experimental.pallas import tpu as pltpu

TB = 8        # batch rows processed per grid step
OUT_W = 128   # lane-dense width of the fused scalar output
NCH = 10      # packed point channels
NPAR = 16     # padded per-row parameter table width


def _criterion_kernel(data_ref, par_ref, out_ref):
    """Vectorized per-batch-row reductions.

    data_ref : (NCH, TB, N)  channels: pdx,pdy,pdz, gtx,gty,gtz, unc, valid, kx, ky
    par_ref  : (TB, NPAR)    [tx,ty,tz, qw,qx,qy,qz, f, ppx, ppy, is_real, 0...]
    out_ref  : (3, TB, OUT_W) rows: l1_sum, unc_sq_sum, masked l2 mean (per row)
    """
    d = data_ref[...]          # (NCH, TB, N)
    par = par_ref[...]         # (TB, NPAR)

    px3, py3, pz3 = d[0], d[1], d[2]     # predicted 3-D points   (TB, N)
    gx3, gy3, gz3 = d[3], d[4], d[5]     # ground-truth 3-D points
    u = d[6]                             # predicted uncertainty
    v = d[7]                             # valid mask (p3D_ids)
    kx, ky = d[8], d[9]                  # ground-truth 2-D keypoints

    # ---- l1 contribution: sum_n valid * ||pd - gt||_2 ----
    dx = px3 - gx3
    dy = py3 - gy3
    dz = pz3 - gz3
    dist = jnp.sqrt(dx * dx + dy * dy + dz * dz)             # (TB, N)
    l1_row = jnp.sum(v * dist, axis=-1, keepdims=True)       # (TB, 1)

    # ---- uncertainty: sum_n (valid - unc)^2 (global sqrt taken in wrapper) ----
    du = v - u
    usq_row = jnp.sum(du * du, axis=-1, keepdims=True)       # (TB, 1)

    # ---- reprojection loss (project_loss), vectorized over the TB rows ----
    tx = par[:, 0:1]
    ty = par[:, 1:2]
    tz = par[:, 2:3]
    qw = par[:, 3:4]
    qx = par[:, 4:5]
    qy = par[:, 5:6]
    qz = par[:, 6:7]
    f = par[:, 7:8]
    ppx = par[:, 8:9]
    ppy = par[:, 9:10]
    real = par[:, 10:11]                                     # (TB, 1)

    # quaternion -> rotation matrix entries (same formula as qvec2rotmat)
    r00 = 1.0 - 2.0 * (qy * qy + qz * qz)
    r01 = 2.0 * (qx * qy - qw * qz)
    r02 = 2.0 * (qz * qx + qw * qy)
    r10 = 2.0 * (qx * qy + qw * qz)
    r11 = 1.0 - 2.0 * (qx * qx + qz * qz)
    r12 = 2.0 * (qy * qz - qw * qx)
    r20 = 2.0 * (qz * qx - qw * qy)
    r21 = 2.0 * (qy * qz + qw * qx)
    r22 = 1.0 - 2.0 * (qx * qx + qy * qy)

    # R @ pt3Ds + t, expanded elementwise on the VPU
    p0 = r00 * px3 + r01 * py3 + r02 * pz3 + tx
    p1 = r10 * px3 + r11 * py3 + r12 * pz3 + ty
    p2 = r20 * px3 + r21 * py3 + r22 * pz3 + tz

    # exact perspective divide: kernel is HBM-bound, so full-precision divide
    # costs nothing on the critical path and keeps pixel-accuracy exact.
    prx = f * p0 / p2 + ppx
    pry = f * p1 / p2 + ppy

    ex = kx - prx
    ey = ky - pry
    err = jnp.sqrt(ex * ex + ey * ey)
    # mask non-real / padded rows BEFORE the reduction with a *select* so
    # inf/NaN from garbage or zero-padded poses never reaches the sum.
    masked = jnp.where(real > 0.5, v * err, 0.0)             # (TB, N)
    n_pts = d.shape[-1]
    l2_row = jnp.sum(masked, axis=-1, keepdims=True) * (1.0 / n_pts)

    out_ref[0] = jnp.broadcast_to(l1_row, (l1_row.shape[0], OUT_W))
    out_ref[1] = jnp.broadcast_to(usq_row, (usq_row.shape[0], OUT_W))
    out_ref[2] = jnp.broadcast_to(l2_row, (l2_row.shape[0], OUT_W))


def _run_kernel(data, params):
    """data: (NCH, B_pad, N) f32; params: (B_pad, NPAR) f32."""
    _, B_pad, N = data.shape
    nb = B_pad // TB
    return pl.pallas_call(
        _criterion_kernel,
        out_shape=jax.ShapeDtypeStruct((3, B_pad, OUT_W), jnp.float32),
        grid=(nb,),
        in_specs=[
            pl.BlockSpec((NCH, TB, N), lambda b: (0, b, 0)),
            pl.BlockSpec((TB, NPAR), lambda b: (b, 0)),
        ],
        out_specs=pl.BlockSpec((3, TB, OUT_W), lambda b: (0, b, 0)),
        compiler_params=pltpu.CompilerParams(
            # batch rows are fully independent -> shard across TCs on v7x
            dimension_semantics=("parallel",)),
    )(data, params)


def criterion_forward(coord_pd, coord_gt_dic, epoch,
                      coef_lrepr=10, start_lrepr=10):
    """Pallas-backed forward of _3DFLCriterion_New.

    Returns (total_loss, l1, l2, uncertainty_loss) as jnp scalars.
    (The `fakezero` object of the original is represented by the scalar 0.0.)
    """
    pd3, unc = coord_pd
    pd3 = pd3.astype(jnp.float32)
    gt3 = coord_gt_dic['p3Ds'].astype(jnp.float32)
    unc = unc.astype(jnp.float32)
    valids = coord_gt_dic['p3D_ids'].astype(jnp.float32)
    xys = coord_gt_dic['xys'].astype(jnp.float32)
    pose = coord_gt_dic['pose'].astype(jnp.float32)
    camera = coord_gt_dic['camera'].astype(jnp.float32)
    real = (coord_gt_dic['is_real_label'] != 0).astype(jnp.float32)

    B, _, N = pd3.shape

    # channel-major packed layout (NCH, B, N): every channel becomes a dense
    # (TB, N) tile in the kernel.
    data = jnp.stack([pd3[:, 0], pd3[:, 1], pd3[:, 2],
                      gt3[:, 0], gt3[:, 1], gt3[:, 2],
                      unc, valids,
                      xys[:, :, 0], xys[:, :, 1]], axis=0)        # (NCH, B, N)

    params = jnp.concatenate(
        [pose, camera[:, 2:5], real[:, None],
         jnp.zeros((B, NPAR - 11), jnp.float32)], axis=1)          # (B, NPAR)

    # pad batch to a multiple of TB; padded rows have valid=0 and is_real=0,
    # so they contribute exactly zero to every reduction.
    B_pad = ((B + TB - 1) // TB) * TB
    if B_pad != B:
        data = jnp.pad(data, ((0, 0), (0, B_pad - B), (0, 0)))
        params = jnp.pad(params, ((0, B_pad - B), (0, 0)))

    out = _run_kernel(data, params)

    l1 = jnp.sum(out[0, :B, 0]) / B
    # torch.norm(valids - coord_pd[1]) is a Frobenius norm of the whole tensor
    uncertainty_loss = jnp.sqrt(jnp.sum(out[1, :B, 0])) / B

    count = jnp.sum(real)
    l2 = jnp.where(count > 0, jnp.sum(out[2, :B, 0]) / jnp.maximum(count, 1.0),
                   0.0)

    base = l1 + uncertainty_loss
    # epoch / start_lrepr kept as host-side (static) control flow, matching the
    # original module; wrap in lax.cond if epoch is ever traced.
    if epoch >= start_lrepr:
        total = base + coef_lrepr * l2
    else:
        total = base
    return total, l1, l2, uncertainty_loss


# ------------------------- pure-JAX reference -------------------------
def _qvec2rotmat_ref(q):
    w, x, y, z = q[0], q[1], q[2], q[3]
    return jnp.array([
        [1 - 2 * y * y - 2 * z * z, 2 * x * y - 2 * w * z, 2 * z * x + 2 * w * y],
        [2 * x * y + 2 * w * z, 1 - 2 * x * x - 2 * z * z, 2 * y * z - 2 * w * x],
        [2 * z * x - 2 * w * y, 2 * y * z + 2 * w * x, 1 - 2 * x * x - 2 * y * y]],
        dtype=jnp.float32)


def _project_loss_ref(gt_pt2Ds, pt3Ds, c_pose, camera, valids):
    R = _qvec2rotmat_ref(c_pose[3:])
    t = c_pose[:3][:, None]
    f, ppx, ppy = camera[2], camera[3], camera[4]
    prd = R @ pt3Ds + t
    px = f * prd[0, :] / prd[2, :] + ppx
    py = f * prd[1, :] / prd[2, :] + ppy
    ex = (gt_pt2Ds[:, 0] - px) ** 2
    ey = (gt_pt2Ds[:, 1] - py) ** 2
    return jnp.mean(valids * jnp.sqrt(ex + ey))


def _reference_forward(coord_pd, gt, epoch, coef=10, start=10):
    pd3, unc = coord_pd
    B = pd3.shape[0]
    valids = gt['p3D_ids']
    se = jnp.linalg.norm(pd3 - gt['p3Ds'], axis=1)
    l1 = jnp.sum(valids * se) / B
    u = jnp.linalg.norm(valids - unc) / B
    l2, count = 0.0, 0
    for i in range(B):
        if int(gt['is_real_label'][i]) != 0:
            l2 = l2 + _project_loss_ref(gt['xys'][i], pd3[i], gt['pose'][i],
                                        gt['camera'][i], valids[i])
            count += 1
    if count != 0:
        l2 = l2 / count
    total = l1 + u + (coef * l2 if epoch >= start else 0.0)
    return total, l1, jnp.asarray(l2, jnp.float32), u


if __name__ == "__main__":
    B, N = 2, 128
    key = jax.random.PRNGKey(0)
    k1, k2, k3, k4, k5 = jax.random.split(key, 5)

    pd3 = 0.5 * jax.random.normal(k1, (B, 3, N), dtype=jnp.float32)
    pd3 = pd3.at[:, 2, :].add(4.0)                      # keep depths positive
    p3Ds = pd3 + 0.1 * jax.random.normal(k2, (B, 3, N), dtype=jnp.float32)
    unc = jax.random.uniform(k3, (B, N), dtype=jnp.float32)
    valids = (jax.random.uniform(k4, (B, N)) > 0.3).astype(jnp.float32)
    xys = 640.0 * jax.random.uniform(k5, (B, N, 2), dtype=jnp.float32)

    q = jnp.array([[1.0, 0.05, -0.03, 0.02],
                   [1.0, -0.02, 0.04, 0.01]], dtype=jnp.float32)
    q = q / jnp.linalg.norm(q, axis=1, keepdims=True)
    t = jnp.array([[0.1, -0.2, 5.0],
                   [0.3, 0.1, 6.0]], dtype=jnp.float32)
    pose = jnp.concatenate([t, q], axis=1)              # (B, 7) = [t | qvec]
    camera = jnp.array([[640., 480., 500., 320., 240.],
                        [640., 480., 450., 320., 240.]], dtype=jnp.float32)
    is_real_label = jnp.array([1, 0], dtype=jnp.int32)

    coord_pd = (pd3, unc)
    coord_gt = {
        'p3Ds': p3Ds,
        'p3D_ids': valids,
        'xys': xys,
        'pose': pose,
        'camera': camera,
        'is_real_label': is_real_label,
    }

    epoch = 12
    out = criterion_forward(coord_pd, coord_gt, epoch,
                            coef_lrepr=10, start_lrepr=10)
    out = jax.block_until_ready(out)

    ref = _reference_forward(coord_pd, coord_gt, epoch, coef=10, start=10)
    for a, b in zip(out, ref):
        assert jnp.allclose(a, b, rtol=2e-3, atol=2e-3), (a, b)

    print("KERNEL_OK")
</pallas_src>

<mosaic_0001>
module attributes {stable_mosaic.version = 11 : i64} {
  func.func @_criterion_kernel(%arg0: i32, %arg1: memref<10x8x128xf32, #tpu.memory_space<vmem>>, %arg2: memref<8x16xf32, #tpu.memory_space<vmem>>, %arg3: memref<3x8x128xf32, #tpu.memory_space<vmem>>) attributes {dimension_semantics = [#tpu.dimension_semantics<parallel>], iteration_bounds = array<i64: 1>, scalar_prefetch = 0 : i64, scratch_operands = 0 : i64, tpu.core_type = #tpu.core_type<tc>, window_params = [{transform_indices = @transform_0, window_bounds = array<i64: 10, 8, 128>}, {transform_indices = @transform_1, window_bounds = array<i64: 8, 16>}, {transform_indices = @transform_2, window_bounds = array<i64: 3, 8, 128>}]} {
    %c0 = arith.constant 0 : index
    %c0_0 = arith.constant 0 : index
    %c0_1 = arith.constant 0 : index
    %0 = vector.load %arg1[%c0, %c0_0, %c0_1] : memref<10x8x128xf32, #tpu.memory_space<vmem>>, vector<10x8x128xf32>
    %c0_2 = arith.constant 0 : index
    %c0_3 = arith.constant 0 : index
    %1 = vector.load %arg2[%c0_2, %c0_3] : memref<8x16xf32, #tpu.memory_space<vmem>>, vector<8x16xf32>
    %2 = vector.extract_strided_slice %0 {offsets = [0, 0, 0], sizes = [1, 8, 128], strides = [1, 1, 1]} : vector<10x8x128xf32> to vector<1x8x128xf32>
    %3 = vector.shape_cast %2 : vector<1x8x128xf32> to vector<8x128xf32>
    %4 = vector.extract_strided_slice %0 {offsets = [1, 0, 0], sizes = [1, 8, 128], strides = [1, 1, 1]} : vector<10x8x128xf32> to vector<1x8x128xf32>
    %5 = vector.shape_cast %4 : vector<1x8x128xf32> to vector<8x128xf32>
    %6 = vector.extract_strided_slice %0 {offsets = [2, 0, 0], sizes = [1, 8, 128], strides = [1, 1, 1]} : vector<10x8x128xf32> to vector<1x8x128xf32>
    %7 = vector.shape_cast %6 : vector<1x8x128xf32> to vector<8x128xf32>
    %8 = vector.extract_strided_slice %0 {offsets = [3, 0, 0], sizes = [1, 8, 128], strides = [1, 1, 1]} : vector<10x8x128xf32> to vector<1x8x128xf32>
    %9 = vector.shape_cast %8 : vector<1x8x128xf32> to vector<8x128xf32>
    %10 = vector.extract_strided_slice %0 {offsets = [4, 0, 0], sizes = [1, 8, 128], strides = [1, 1, 1]} : vector<10x8x128xf32> to vector<1x8x128xf32>
    %11 = vector.shape_cast %10 : vector<1x8x128xf32> to vector<8x128xf32>
    %12 = vector.extract_strided_slice %0 {offsets = [5, 0, 0], sizes = [1, 8, 128], strides = [1, 1, 1]} : vector<10x8x128xf32> to vector<1x8x128xf32>
    %13 = vector.shape_cast %12 : vector<1x8x128xf32> to vector<8x128xf32>
    %14 = vector.extract_strided_slice %0 {offsets = [6, 0, 0], sizes = [1, 8, 128], strides = [1, 1, 1]} : vector<10x8x128xf32> to vector<1x8x128xf32>
    %15 = vector.shape_cast %14 : vector<1x8x128xf32> to vector<8x128xf32>
    %16 = vector.extract_strided_slice %0 {offsets = [7, 0, 0], sizes = [1, 8, 128], strides = [1, 1, 1]} : vector<10x8x128xf32> to vector<1x8x128xf32>
    %17 = vector.shape_cast %16 : vector<1x8x128xf32> to vector<8x128xf32>
    %18 = vector.extract_strided_slice %0 {offsets = [8, 0, 0], sizes = [1, 8, 128], strides = [1, 1, 1]} : vector<10x8x128xf32> to vector<1x8x128xf32>
    %19 = vector.shape_cast %18 : vector<1x8x128xf32> to vector<8x128xf32>
    %20 = vector.extract_strided_slice %0 {offsets = [9, 0, 0], sizes = [1, 8, 128], strides = [1, 1, 1]} : vector<10x8x128xf32> to vector<1x8x128xf32>
    %21 = vector.shape_cast %20 : vector<1x8x128xf32> to vector<8x128xf32>
    %22 = arith.subf %3, %9 : vector<8x128xf32>
    %23 = arith.subf %5, %11 : vector<8x128xf32>
    %24 = arith.subf %7, %13 : vector<8x128xf32>
    %25 = arith.mulf %22, %22 : vector<8x128xf32>
    %26 = arith.mulf %23, %23 : vector<8x128xf32>
    %27 = arith.addf %25, %26 : vector<8x128xf32>
    %28 = arith.mulf %24, %24 : vector<8x128xf32>
    %29 = arith.addf %27, %28 : vector<8x128xf32>
    %30 = math.sqrt %29 : vector<8x128xf32>
    %31 = arith.mulf %17, %30 : vector<8x128xf32>
    %cst = arith.constant dense<0.000000e+00> : vector<8xf32>
    %32 = vector.multi_reduction <add>, %31, %cst [1] : vector<8x128xf32> to vector<8xf32>
    %33 = vector.shape_cast %32 : vector<8xf32> to vector<8x1xf32>
    %34 = arith.subf %17, %15 : vector<8x128xf32>
    %35 = arith.mulf %34, %34 : vector<8x128xf32>
    %cst_4 = arith.constant dense<0.000000e+00> : vector<8xf32>
    %36 = vector.multi_reduction <add>, %35, %cst_4 [1] : vector<8x128xf32> to vector<8xf32>
    %37 = vector.shape_cast %36 : vector<8xf32> to vector<8x1xf32>
    %38 = vector.extract_strided_slice %1 {offsets = [0, 0], sizes = [8, 1], strides = [1, 1]} : vector<8x16xf32> to vector<8x1xf32>
    %39 = vector.extract_strided_slice %1 {offsets = [0, 1], sizes = [8, 1], strides = [1, 1]} : vector<8x16xf32> to vector<8x1xf32>
    %40 = vector.extract_strided_slice %1 {offsets = [0, 2], sizes = [8, 1], strides = [1, 1]} : vector<8x16xf32> to vector<8x1xf32>
    %41 = vector.extract_strided_slice %1 {offsets = [0, 3], sizes = [8, 1], strides = [1, 1]} : vector<8x16xf32> to vector<8x1xf32>
    %42 = vector.extract_strided_slice %1 {offsets = [0, 4], sizes = [8, 1], strides = [1, 1]} : vector<8x16xf32> to vector<8x1xf32>
    %43 = vector.extract_strided_slice %1 {offsets = [0, 5], sizes = [8, 1], strides = [1, 1]} : vector<8x16xf32> to vector<8x1xf32>
    %44 = vector.extract_strided_slice %1 {offsets = [0, 6], sizes = [8, 1], strides = [1, 1]} : vector<8x16xf32> to vector<8x1xf32>
    %45 = vector.extract_strided_slice %1 {offsets = [0, 7], sizes = [8, 1], strides = [1, 1]} : vector<8x16xf32> to vector<8x1xf32>
    %46 = vector.extract_strided_slice %1 {offsets = [0, 8], sizes = [8, 1], strides = [1, 1]} : vector<8x16xf32> to vector<8x1xf32>
    %47 = vector.extract_strided_slice %1 {offsets = [0, 9], sizes = [8, 1], strides = [1, 1]} : vector<8x16xf32> to vector<8x1xf32>
    %48 = vector.extract_strided_slice %1 {offsets = [0, 10], sizes = [8, 1], strides = [1, 1]} : vector<8x16xf32> to vector<8x1xf32>
    %49 = arith.mulf %43, %43 : vector<8x1xf32>
    %50 = arith.mulf %44, %44 : vector<8x1xf32>
    %51 = arith.addf %49, %50 : vector<8x1xf32>
    %cst_5 = arith.constant 2.000000e+00 : f32
    %52 = vector.broadcast %cst_5 : f32 to vector<8x1xf32>
    %53 = arith.mulf %52, %51 : vector<8x1xf32>
    %cst_6 = arith.constant 1.000000e+00 : f32
    %54 = vector.broadcast %cst_6 : f32 to vector<8x1xf32>
    %55 = arith.subf %54, %53 : vector<8x1xf32>
    %56 = arith.mulf %42, %43 : vector<8x1xf32>
    %57 = arith.mulf %41, %44 : vector<8x1xf32>
    %58 = arith.subf %56, %57 : vector<8x1xf32>
    %cst_7 = arith.constant 2.000000e+00 : f32
    %59 = vector.broadcast %cst_7 : f32 to vector<8x1xf32>
    %60 = arith.mulf %59, %58 : vector<8x1xf32>
    %61 = arith.mulf %44, %42 : vector<8x1xf32>
    %62 = arith.mulf %41, %43 : vector<8x1xf32>
    %63 = arith.addf %61, %62 : vector<8x1xf32>
    %cst_8 = arith.constant 2.000000e+00 : f32
    %64 = vector.broadcast %cst_8 : f32 to vector<8x1xf32>
    %65 = arith.mulf %64, %63 : vector<8x1xf32>
    %66 = arith.mulf %42, %43 : vector<8x1xf32>
    %67 = arith.mulf %41, %44 : vector<8x1xf32>
    %68 = arith.addf %66, %67 : vector<8x1xf32>
    %cst_9 = arith.constant 2.000000e+00 : f32
    %69 = vector.broadcast %cst_9 : f32 to vector<8x1xf32>
    %70 = arith.mulf %69, %68 : vector<8x1xf32>
    %71 = arith.mulf %42, %42 : vector<8x1xf32>
    %72 = arith.mulf %44, %44 : vector<8x1xf32>
    %73 = arith.addf %71, %72 : vector<8x1xf32>
    %cst_10 = arith.constant 2.000000e+00 : f32
    %74 = vector.broadcast %cst_10 : f32 to vector<8x1xf32>
    %75 = arith.mulf %74, %73 : vector<8x1xf32>
    %cst_11 = arith.constant 1.000000e+00 : f32
    %76 = vector.broadcast %cst_11 : f32 to vector<8x1xf32>
    %77 = arith.subf %76, %75 : vector<8x1xf32>
    %78 = arith.mulf %43, %44 : vector<8x1xf32>
    %79 = arith.mulf %41, %42 : vector<8x1xf32>
    %80 = arith.subf %78, %79 : vector<8x1xf32>
    %cst_12 = arith.constant 2.000000e+00 : f32
    %81 = vector.broadcast %cst_12 : f32 to vector<8x1xf32>
    %82 = arith.mulf %81, %80 : vector<8x1xf32>
    %83 = arith.mulf %44, %42 : vector<8x1xf32>
    %84 = arith.mulf %41, %43 : vector<8x1xf32>
    %85 = arith.subf %83, %84 : vector<8x1xf32>
    %cst_13 = arith.constant 2.000000e+00 : f32
    %86 = vector.broadcast %cst_13 : f32 to vector<8x1xf32>
    %87 = arith.mulf %86, %85 : vector<8x1xf32>
    %88 = arith.mulf %43, %44 : vector<8x1xf32>
    %89 = arith.mulf %41, %42 : vector<8x1xf32>
    %90 = arith.addf %88, %89 : vector<8x1xf32>
    %cst_14 = arith.constant 2.000000e+00 : f32
    %91 = vector.broadcast %cst_14 : f32 to vector<8x1xf32>
    %92 = arith.mulf %91, %90 : vector<8x1xf32>
    %93 = arith.mulf %42, %42 : vector<8x1xf32>
    %94 = arith.mulf %43, %43 : vector<8x1xf32>
    %95 = arith.addf %93, %94 : vector<8x1xf32>
    %cst_15 = arith.constant 2.000000e+00 : f32
    %96 = vector.broadcast %cst_15 : f32 to vector<8x1xf32>
    %97 = arith.mulf %96, %95 : vector<8x1xf32>
    %cst_16 = arith.constant 1.000000e+00 : f32
    %98 = vector.broadcast %cst_16 : f32 to vector<8x1xf32>
    %99 = arith.subf %98, %97 : vector<8x1xf32>
    %100 = vector.broadcast %55 : vector<8x1xf32> to vector<8x128xf32>
    %101 = arith.mulf %100, %3 : vector<8x128xf32>
    %102 = vector.broadcast %60 : vector<8x1xf32> to vector<8x128xf32>
    %103 = arith.mulf %102, %5 : vector<8x128xf32>
    %104 = arith.addf %101, %103 : vector<8x128xf32>
    %105 = vector.broadcast %65 : vector<8x1xf32> to vector<8x128xf32>
    %106 = arith.mulf %105, %7 : vector<8x128xf32>
    %107 = arith.addf %104, %106 : vector<8x128xf32>
    %108 = vector.broadcast %38 : vector<8x1xf32> to vector<8x128xf32>
    %109 = arith.addf %107, %108 : vector<8x128xf32>
    %110 = vector.broadcast %70 : vector<8x1xf32> to vector<8x128xf32>
    %111 = arith.mulf %110, %3 : vector<8x128xf32>
    %112 = vector.broadcast %77 : vector<8x1xf32> to vector<8x128xf32>
    %113 = arith.mulf %112, %5 : vector<8x128xf32>
    %114 = arith.addf %111, %113 : vector<8x128xf32>
    %115 = vector.broadcast %82 : vector<8x1xf32> to vector<8x128xf32>
    %116 = arith.mulf %115, %7 : vector<8x128xf32>
    %117 = arith.addf %114, %116 : vector<8x128xf32>
    %118 = vector.broadcast %39 : vector<8x1xf32> to vector<8x128xf32>
    %119 = arith.addf %117, %118 : vector<8x128xf32>
    %120 = vector.broadcast %87 : vector<8x1xf32> to vector<8x128xf32>
    %121 = arith.mulf %120, %3 : vector<8x128xf32>
    %122 = vector.broadcast %92 : vector<8x1xf32> to vector<8x128xf32>
    %123 = arith.mulf %122, %5 : vector<8x128xf32>
    %124 = arith.addf %121, %123 : vector<8x128xf32>
    %125 = vector.broadcast %99 : vector<8x1xf32> to vector<8x128xf32>
    %126 = arith.mulf %125, %7 : vector<8x128xf32>
    %127 = arith.addf %124, %126 : vector<8x128xf32>
    %128 = vector.broadcast %40 : vector<8x1xf32> to vector<8x128xf32>
    %129 = arith.addf %127, %128 : vector<8x128xf32>
    %130 = vector.broadcast %45 : vector<8x1xf32> to vector<8x128xf32>
    %131 = arith.mulf %130, %109 : vector<8x128xf32>
    %132 = arith.divf %131, %129 : vector<8x128xf32>
    %133 = vector.broadcast %46 : vector<8x1xf32> to vector<8x128xf32>
    %134 = arith.addf %132, %133 : vector<8x128xf32>
    %135 = vector.broadcast %45 : vector<8x1xf32> to vector<8x128xf32>
    %136 = arith.mulf %135, %119 : vector<8x128xf32>
    %137 = arith.divf %136, %129 : vector<8x128xf32>
    %138 = vector.broadcast %47 : vector<8x1xf32> to vector<8x128xf32>
    %139 = arith.addf %137, %138 : vector<8x128xf32>
    %140 = arith.subf %19, %134 : vector<8x128xf32>
    %141 = arith.subf %21, %139 : vector<8x128xf32>
    %142 = arith.mulf %140, %140 : vector<8x128xf32>
    %143 = arith.mulf %141, %141 : vector<8x128xf32>
    %144 = arith.addf %142, %143 : vector<8x128xf32>
    %145 = math.sqrt %144 : vector<8x128xf32>
    %cst_17 = arith.constant 5.000000e-01 : f32
    %146 = vector.broadcast %cst_17 : f32 to vector<8x1xf32>
    %147 = arith.cmpf ogt, %48, %146 : vector<8x1xf32>
    %148 = arith.mulf %17, %145 : vector<8x128xf32>
    %cst_18 = arith.constant 0.000000e+00 : f32
    %149 = vector.shape_cast %147 : vector<8x1xi1> to vector<8x1xi1>
    %150 = vector.broadcast %149 : vector<8x1xi1> to vector<8x128xi1>
    %151 = vector.broadcast %cst_18 : f32 to vector<8x128xf32>
    %152 = arith.select %150, %148, %151 : vector<8x128xi1>, vector<8x128xf32>
    %cst_19 = arith.constant dense<0.000000e+00> : vector<8xf32>
    %153 = vector.multi_reduction <add>, %152, %cst_19 [1] : vector<8x128xf32> to vector<8xf32>
    %154 = vector.shape_cast %153 : vector<8xf32> to vector<8x1xf32>
    %cst_20 = arith.constant 7.812500e-03 : f32
    %155 = vector.broadcast %cst_20 : f32 to vector<8x1xf32>
    %156 = arith.mulf %154, %155 : vector<8x1xf32>
    %157 = vector.shape_cast %33 : vector<8x1xf32> to vector<8x1xf32>
    %158 = vector.broadcast %157 : vector<8x1xf32> to vector<8x128xf32>
    %c0_21 = arith.constant 0 : index
    %c0_22 = arith.constant 0 : index
    %c0_23 = arith.constant 0 : index
    %159 = vector.load %arg3[%c0_21, %c0_22, %c0_23] : memref<3x8x128xf32, #tpu.memory_space<vmem>>, vector<1x8x128xf32>
    %160 = vector.shape_cast %159 : vector<1x8x128xf32> to vector<8x128xf32>
    %161 = vector.shape_cast %158 : vector<8x128xf32> to vector<1x8x128xf32>
    tpu.vector_store %arg3[%c0_21, %c0_22, %c0_23], %161 {strides = array<i32>} : memref<3x8x128xf32, #tpu.memory_space<vmem>>, vector<1x8x128xf32>,
    %162 = vector.shape_cast %37 : vector<8x1xf32> to vector<8x1xf32>
    %163 = vector.broadcast %162 : vector<8x1xf32> to vector<8x128xf32>
    %c1 = arith.constant 1 : index
    %c0_24 = arith.constant 0 : index
    %c0_25 = arith.constant 0 : index
    %164 = vector.load %arg3[%c1, %c0_24, %c0_25] : memref<3x8x128xf32, #tpu.memory_space<vmem>>, vector<1x8x128xf32>
    %165 = vector.shape_cast %164 : vector<1x8x128xf32> to vector<8x128xf32>
    %166 = vector.shape_cast %163 : vector<8x128xf32> to vector<1x8x128xf32>
    tpu.vector_store %arg3[%c1, %c0_24, %c0_25], %166 {strides = array<i32>} : memref<3x8x128xf32, #tpu.memory_space<vmem>>, vector<1x8x128xf32>,
    %167 = vector.shape_cast %156 : vector<8x1xf32> to vector<8x1xf32>
    %168 = vector.broadcast %167 : vector<8x1xf32> to vector<8x128xf32>
    %c2 = arith.constant 2 : index
    %c0_26 = arith.constant 0 : index
    %c0_27 = arith.constant 0 : index
    %169 = vector.load %arg3[%c2, %c0_26, %c0_27] : memref<3x8x128xf32, #tpu.memory_space<vmem>>, vector<1x8x128xf32>
    %170 = vector.shape_cast %169 : vector<1x8x128xf32> to vector<8x128xf32>
    %171 = vector.shape_cast %168 : vector<8x128xf32> to vector<1x8x128xf32>
    tpu.vector_store %arg3[%c2, %c0_26, %c0_27], %171 {strides = array<i32>} : memref<3x8x128xf32, #tpu.memory_space<vmem>>, vector<1x8x128xf32>,
    return
  }
  func.func @transform_0(%arg0: i32) -> (i32, i32, i32) {
    %c0_i32 = arith.constant 0 : i32
    %c0_i32_0 = arith.constant 0 : i32
    %c0_i32_1 = arith.constant 0 : i32
    return %c0_i32, %arg0, %c0_i32_0 : i32, i32, i32
  }
  func.func @transform_1(%arg0: i32) -> (i32, i32) {
    %c0_i32 = arith.constant 0 : i32
    %c0_i32_0 = arith.constant 0 : i32
    return %arg0, %c0_i32 : i32, i32
  }
  func.func @transform_2(%arg0: i32) -> (i32, i32, i32) {
    %c0_i32 = arith.constant 0 : i32
    %c0_i32_0 = arith.constant 0 : i32
    %c0_i32_1 = arith.constant 0 : i32
    return %c0_i32, %arg0, %c0_i32_0 : i32, i32, i32
  }
}

</mosaic_0001>

<llo_original>
// kernel: tpu_custom_call.1
$region0: #{tpu_custom_call.1}
  #allocation0 [shape = 'u32[]', space=smem, size = 0x4, offset = 0x4, fixed_abs, tag = 'smem constant byte address 0x4 - core index']
  #allocation1 [shape = 'u32[144,128]{1,0:T(1,128)}', space=vmem, size = 0x12000, scoped, tag = 'internal scratch']
  %s0 = inlined_call_operand.hbm [shape: f32[10,8,128], index: 0, kind: input, shape index: {}]
  %s1 = inlined_call_operand.hbm [shape: f32[8,16], index: 1, kind: input, shape index: {}]
  %s2 = inlined_call_operand.hbm [shape: f32[3,8,128], index: 2, kind: output, shape index: {}]
  %s3 = sld [smem:[#allocation0]]
  $region26: #{tpu_custom_call.1} parent=0
    _
  %s5 = ssub.s32 1, %s3
  %s6 = scalar_select 0, %s5, %s3
  $region1: #{tpu_custom_call.1} parent=0
    #allocation2 [shape = 'u8[40960]{0}', space=vmem, size = 0xa000, scoped, tag = 'input window, operand 0, single buffered']
    #allocation3 [shape = 's32[1]{0}', space=sflag, size = 0x4, scoped, tag = 'scoped memory for tpu_custom_call.1']
    #allocation4 [shape = 's32[1]{0}', space=sflag, size = 0x4, scoped, tag = 'scoped memory for tpu_custom_call.1']
    #allocation5 [shape = 'u8[4096]{0}', space=vmem, size = 0x1000, scoped, tag = 'input window, operand 1, single buffered']
    #allocation6 [shape = 's32[1]{0}', space=sflag, size = 0x4, scoped, tag = 'scoped memory for tpu_custom_call.1']
    #allocation7 [shape = 'u8[12288]{0}', space=vmem, size = 0x3000, scoped, tag = 'output window, operand 0, single buffered']
    %7 = vsyncpa [#allocation3], 0
    %8 = vsyncpa [#allocation6], 0
    %9 = vsyncpa [#allocation4], 0
    // Predicated region
    $region2: #{tpu_custom_call.1} parent=1 // pred_check
      _
    $region3: #{tpu_custom_call.1} parent=1 // pred_check_branch
      %11 = sbr.rel (0) target = $region5
    $region4: #{tpu_custom_call.1} parent=1 // pred_region
      %s13 = ssub.s32 1280, 1280
      %14 = vsyncadd [#allocation3], %s13
      %s15 = sshll.u32 [#allocation2], 4
      %s16 = int_to_ptr.vmem [resolvable:$true] %s15
      %21 = dma.hbm_to_vmem [thread:$0]  %s0, 1280, %s16, [#allocation3], 128, 128, 8
    $region5: #{tpu_custom_call.1} parent=1 // pred_fallthru
      _
    // Predicated region
    $region6: #{tpu_custom_call.1} parent=1 // pred_check
      _
    $region7: #{tpu_custom_call.1} parent=1 // pred_check_branch
      %23 = sbr.rel (0) target = $region9
    $region8: #{tpu_custom_call.1} parent=1 // pred_region
      %s25 = ssub.s32 128, 128
      %26 = vsyncadd [#allocation6], %s25
      %s28 = sshll.u32 [#allocation5], 4
      %s29 = int_to_ptr.vmem [resolvable:$true] %s28
      %31 = dma.hbm_to_vmem [thread:$0]  %s1, 128, %s29, [#allocation6]
    $region9: #{tpu_custom_call.1} parent=1 // pred_fallthru
      _
    // Predicated region
    $region10: #{tpu_custom_call.1} parent=1 // pred_check
      _
    $region11: #{tpu_custom_call.1} parent=1 // pred_check_branch
      %33 = sbr.rel (0) target = $region13
    $region12: #{tpu_custom_call.1} parent=1 // pred_region
      %34 = dma.done [#allocation3], 1280
    $region13: #{tpu_custom_call.1} parent=1 // pred_fallthru
      _
    // Predicated region
    $region14: #{tpu_custom_call.1} parent=1 // pred_check
      _
    $region15: #{tpu_custom_call.1} parent=1 // pred_check_branch
      %36 = sbr.rel (0) target = $region17
    $region16: #{tpu_custom_call.1} parent=1 // pred_region
      %37 = dma.done [#allocation6], 128
    $region17: #{tpu_custom_call.1} parent=1 // pred_fallthru
      _
    %v38 = vld [vmem:[#allocation2] sm:$0xff]
    %v39 = vld [vmem:[#allocation2 + $0x8] sm:$0xff]
    %v40 = vld [vmem:[#allocation2 + $0x10] sm:$0xff]
    %v41 = vld [vmem:[#allocation2 + $0x18] sm:$0xff]
    %v42 = vld [vmem:[#allocation2 + $0x20] sm:$0xff]
    %v43 = vld [vmem:[#allocation2 + $0x28] sm:$0xff]
    %v44 = vld [vmem:[#allocation2 + $0x30] sm:$0xff]
    %v45 = vld [vmem:[#allocation2 + $0x38] sm:$0xff]
    %v46 = vld [vmem:[#allocation2 + $0x40] sm:$0xff]
    %v47 = vld [vmem:[#allocation2 + $0x48] sm:$0xff]
    %v48 = vld [vmem:[#allocation5] sm:$0xff]
    %v49 = vsub.f32 %v38, %v41
    %v50 = vsub.f32 %v39, %v42
    %v51 = vsub.f32 %v40, %v43
    %v52 = vmul.f32 %v49, %v49
    %v53 = vmul.f32 %v50, %v50
    %v54 = vadd.f32 %v52, %v53
    %v55 = vmul.f32 %v51, %v51
    %v56 = vadd.f32 %v54, %v55
    %v57 = vrsqrt.pop %v56
    %v58 = vmul.f32 %v56, %v57
    %vm59 = vcmp.eq.f32.partialorder %v56, inf
    %v60 = vsel %vm59, %v56, %v58
    %vm61 = vcmp.eq.f32.partialorder %v56, 0.0
    %v62 = vand.u32 %v56, 2147483648
    %v63 = vsel %vm61, %v62, %v60
    %v64 = vmul.f32 %v45, %v63
    %65 = vadd.xlane.f32.xlu0 %v64
    %v66 = vpop.xlane.xlu0 %65
    %v67 = vsub.f32 %v45, %v44
    %v68 = vmul.f32 %v67, %v67
    %69 = vadd.xlane.f32.xlu0 %v68
    %v70 = vpop.xlane.xlu0 %69
    %v71 = vmul.f32 %v48, %v48
    %73 = vrot.lane.b32.xlu0 %v71, 127
    %v74 = vpop.permute.xlu0 %73
    %v76 = vadd.f32 %v71, %v74
    %v77 = vmul.f32 %v76, 2.0
    %v78 = vsub.f32 1.0, %v77
    %80 = vrot.lane.b32.xlu0 %v48, 127
    %v81 = vpop.permute.xlu0 %80
    %v83 = vmul.f32 %v48, %v81
    %84 = vrot.lane.b32.xlu0 %v48, 125
    %v85 = vpop.permute.xlu0 %84
    %v87 = vmul.f32 %v48, %v85
    %89 = vrot.lane.b32.xlu0 %v87, 1
    %v90 = vpop.permute.xlu0 %89
    %v92 = vsub.f32 %v83, %v90
    %v93 = vmul.f32 %v92, 2.0
    %94 = vrot.lane.b32.xlu0 %v48, 2
    %v95 = vpop.permute.xlu0 %94
    %v97 = vmul.f32 %v48, %v95
    %98 = vrot.lane.b32.xlu0 %v48, 126
    %v99 = vpop.permute.xlu0 %98
    %v101 = vmul.f32 %v48, %v99
    %103 = vrot.lane.b32.xlu0 %v101, 3
    %v104 = vpop.permute.xlu0 %103
    %v106 = vadd.f32 %v97, %v104
    %v107 = vmul.f32 %v106, 2.0
    %v108 = vadd.f32 %v83, %v90
    %v109 = vmul.f32 %v108, 2.0
    %110 = vrot.lane.b32.xlu0 %v71, 126
    %v111 = vpop.permute.xlu0 %110
    %v113 = vadd.f32 %v71, %v111
    %v114 = vmul.f32 %v113, 2.0
    %v115 = vsub.f32 1.0, %v114
    %117 = vrot.lane.b32.xlu0 %v83, 2
    %v118 = vpop.permute.xlu0 %117
    %v120 = vsub.f32 %v83, %v118
    %v121 = vmul.f32 %v120, 2.0
    %v122 = vsub.f32 %v97, %v104
    %v123 = vmul.f32 %v122, 2.0
    %v124 = vadd.f32 %v83, %v118
    %v125 = vmul.f32 %v124, 2.0
    %127 = vset.pattern.permute.xlu0 5
    %128 = vperm.xlu0 %127, %v78
    %v129 = vpop.permute.xlu0 %128
    %v131 = vmul.f32 %v129, %v38
    %133 = vset.pattern.permute.xlu0 4
    %134 = vperm.xlu0 %133, %v93
    %v135 = vpop.permute.xlu0 %134
    %v137 = vmul.f32 %v135, %v39
    %v138 = vadd.f32 %v131, %v137
    %140 = vset.pattern.permute.xlu0 6
    %141 = vperm.xlu0 %140, %v107
    %v142 = vpop.permute.xlu0 %141
    %v144 = vmul.f32 %v142, %v40
    %v145 = vadd.f32 %v138, %v144
    %146 = vset.pattern.permute.xlu0 0
    %147 = vperm.xlu0 %146, %v48
    %v148 = vpop.permute.xlu0 %147
    %v150 = vadd.f32 %v145, %v148
    %152 = vset.pattern.permute.xlu0 4
    %153 = vperm.xlu0 %152, %v109
    %v154 = vpop.permute.xlu0 %153
    %v156 = vmul.f32 %v154, %v38
    %158 = vset.pattern.permute.xlu0 4
    %159 = vperm.xlu0 %158, %v115
    %v160 = vpop.permute.xlu0 %159
    %v162 = vmul.f32 %v160, %v39
    %v163 = vadd.f32 %v156, %v162
    %165 = vset.pattern.permute.xlu0 5
    %166 = vperm.xlu0 %165, %v121
    %v167 = vpop.permute.xlu0 %166
    %v169 = vmul.f32 %v167, %v40
    %v170 = vadd.f32 %v163, %v169
    %171 = vset.pattern.permute.xlu0 1
    %172 = vperm.xlu0 %171, %v48
    %v173 = vpop.permute.xlu0 %172
    %v175 = vadd.f32 %v170, %v173
    %177 = vset.pattern.permute.xlu0 6
    %178 = vperm.xlu0 %177, %v123
    %v179 = vpop.permute.xlu0 %178
    %v181 = vmul.f32 %v179, %v38
    %183 = vset.pattern.permute.xlu0 5
    %184 = vperm.xlu0 %183, %v125
    %v185 = vpop.permute.xlu0 %184
    %v187 = vmul.f32 %v185, %v39
    %v188 = vadd.f32 %v181, %v187
    %189 = vset.pattern.permute.xlu0 4
    %190 = vperm.xlu0 %189, %v78
    %v191 = vpop.permute.xlu0 %190
    %v193 = vmul.f32 %v191, %v40
    %v194 = vadd.f32 %v188, %v193
    %195 = vset.pattern.permute.xlu0 2
    %196 = vperm.xlu0 %195, %v48
    %v197 = vpop.permute.xlu0 %196
    %v199 = vadd.f32 %v194, %v197
    %200 = vset.pattern.permute.xlu0 7
    %201 = vperm.xlu0 %200, %v48
    %v202 = vpop.permute.xlu0 %201
    %v204 = vmul.f32 %v202, %v150
    %v205 = vrcp.pop %v199
    %v206 = vmul.f32 %v204, %v205
    %207 = vset.pattern.permute.xlu0 8
    %208 = vperm.xlu0 %207, %v48
    %v209 = vpop.permute.xlu0 %208
    %v211 = vadd.f32 %v206, %v209
    %v212 = vmul.f32 %v202, %v175
    %v213 = vmul.f32 %v212, %v205
    %214 = vset.pattern.permute.xlu0 9
    %215 = vperm.xlu0 %214, %v48
    %v216 = vpop.permute.xlu0 %215
    %v218 = vadd.f32 %v213, %v216
    %v219 = vsub.f32 %v46, %v211
    %v220 = vsub.f32 %v47, %v218
    %v221 = vmul.f32 %v219, %v219
    %v222 = vmul.f32 %v220, %v220
    %v223 = vadd.f32 %v221, %v222
    %v224 = vrsqrt.pop %v223
    %v225 = vmul.f32 %v223, %v224
    %vm226 = vcmp.eq.f32.partialorder %v223, inf
    %v227 = vsel %vm226, %v223, %v225
    %vm228 = vcmp.eq.f32.partialorder %v223, 0.0
    %v229 = vand.u32 %v223, 2147483648
    %v230 = vsel %vm228, %v229, %v227
    %vm231 = vcmp.gt.f32.partialorder %v48, 0.5
    %v232 = vmul.f32 %v45, %v230
    %v233 = vsel %vm231, 1, 0
    %234 = vset.pattern.permute.xlu0 10
    %235 = vperm.xlu0 %234, %v233
    %v236 = vpop.permute.xlu0 %235
    %vm237 = vcmp.eq.s32.totalorder %v236, 1
    %v238 = vsel %vm237, %v232, 0.0
    %239 = vadd.xlane.f32.xlu0 %v238
    %v240 = vpop.xlane.xlu0 %239
    %v241 = vmul.f32 %v240, 0.0078125
    %242 = vst [vmem:[#allocation7] sm:$0xff] %v66
    %s243 = scalar_lea.vmem [#allocation7], 8
    %244 = vst [vmem:[%s243] sm:$0xff] %v70
    %s245 = scalar_lea.vmem [#allocation7], 16
    %246 = vst [vmem:[%s245] sm:$0xff] %v241
    // Predicated region
    $region18: #{tpu_custom_call.1} parent=1 // pred_check
      _
    $region19: #{tpu_custom_call.1} parent=1 // pred_check_branch
      %248 = sbr.rel (0) target = $region21
    $region20: #{tpu_custom_call.1} parent=1 // pred_region
      %s250 = ssub.s32 384, 384
      %251 = vsyncadd [#allocation4], %s250
      %s252 = sshll.u32 [#allocation7], 4
      %s253 = int_to_ptr.vmem [resolvable:$true] %s252
      %258 = dma.vmem_to_hbm [thread:$0]  %s253, 384, %s2, [#allocation4], 128, 128, 8
    $region21: #{tpu_custom_call.1} parent=1 // pred_fallthru
      _
    // Predicated region
    $region22: #{tpu_custom_call.1} parent=1 // pred_check
      _
    $region23: #{tpu_custom_call.1} parent=1 // pred_check_branch
      %260 = sbr.rel (0) target = $region25
    $region24: #{tpu_custom_call.1} parent=1 // pred_region
      %261 = dma.done [#allocation4], 384
    $region25: #{tpu_custom_call.1} parent=1 // pred_fallthru
      _
    %262 = vsyncpa [#allocation3], 1
    %263 = vsyncpa [#allocation6], 1
    %264 = vsyncpa [#allocation4], 1

</llo_original>
